<compile_context>
chip_gen: v6e
topology: v6e:2x2x1
jax: 0.10.0
libtpu: 0.0.40
codegen_flags: <defaults>
</compile_context>

<pallas_src>
import jax
import jax.numpy as jnp
from jax.experimental import pallas as pl
from jax.experimental.pallas import tpu as pltpu


NEG_SLOPE = 0.2


def _leaky_relu(v):
    return jnp.where(v >= 0, v, NEG_SLOPE * v)


# --------------------------------------------------------------------------- #
# Kernel: residual 1x1-conv MLP on one (C, TILE) lane-dense spectrum block.   #
# Channels on sublanes, interleaved real/imag spatial positions on lanes.     #
# --------------------------------------------------------------------------- #
def _spectral_mlp_kernel(x_ref, w1_ref, b1_ref, w2_ref, b2_ref, w3_ref, b3_ref,
                         o_ref):
    x = x_ref[0]                                   # (C, TILE) f32
    w1 = w1_ref[...]; w2 = w2_ref[...]; w3 = w3_ref[...]
    b1 = b1_ref[...]; b2 = b2_ref[...]; b3 = b3_ref[...]

    # Matmul inputs follow the weight dtype (f32 or bf16); accumulation, bias,
    # leaky-relu and the residual add stay in f32 (v5e-safe elementwise path).
    h = jnp.dot(w1, x.astype(w1.dtype), preferred_element_type=jnp.float32) + b1
    h = _leaky_relu(h)
    h = jnp.dot(w2, h.astype(w2.dtype), preferred_element_type=jnp.float32) + b2
    h = _leaky_relu(h)
    y = jnp.dot(w3, h.astype(w3.dtype), preferred_element_type=jnp.float32) + b3
    o_ref[0] = x + y


# --------------------------------------------------------------------------- #
# Hardware-aware tiling.                                                      #
# --------------------------------------------------------------------------- #
def _vmem_physical_bytes():
    try:
        info = pltpu.get_tpu_info()
        cap = int(getattr(info, "vmem_capacity_bytes", 0))
        if cap > 0:
            return cap
    except Exception:
        pass
    return 64 * 1024 * 1024          # conservative default (v7x has the least VMEM)


def _choose_spatial_tile(s_pad, c, weight_bytes, batch, *, dtype_bytes=4):
    """Pick a lane-dense spatial tile + vmem limit from the chip's real VMEM.

    Per grid step VMEM accounting (per lane element of the tile):
      * double-buffered input block   : 2 * C * 4
      * double-buffered output block  : 2 * C * 4
      * MLP intermediates (h1, h2, y, loaded x) : ~4 * C * 4
    plus the (possibly double-buffered) weight/bias blocks and ~2 MiB slack.
    """
    physical = _vmem_physical_bytes()
    vmem_limit = min(physical * 3 // 4, 96 * 1024 * 1024)   # 96 MiB v5e/v6e, 48 MiB v7x

    per_lane = 8 * c * dtype_bytes
    budget = vmem_limit - weight_bytes - (2 << 20)
    cap = max(128, (budget // per_lane) // 128 * 128)

    if s_pad <= cap:
        tile = s_pad
    else:
        tile = cap
        t = cap
        # Prefer an evenly-dividing tile, but never shrink below cap/2 for it.
        while t >= max(128, cap // 2):
            if s_pad % t == 0:
                tile = t
                break
            t -= 128

    # v7x has 2 TensorCores per chip: make sure there are >= 2 parallel steps.
    if batch * (-(-s_pad // tile)) < 2 and s_pad >= 256:
        tile = ((s_pad // 2 + 127) // 128) * 128

    return tile, int(vmem_limit)


# --------------------------------------------------------------------------- #
# pallas_call wrapper for the spectral MLP.                                   #
# --------------------------------------------------------------------------- #
def _spectral_mlp(x, params):
    """x: (B, C, S_pad) f32 interleaved spectrum. Returns x + MLP(x)."""
    b, c, s = x.shape

    weight_bytes = sum(int(v.size) * v.dtype.itemsize for v in params.values())
    tile, vmem_limit = _choose_spatial_tile(s, c, 2 * weight_bytes, b)
    num_tiles = pl.cdiv(s, tile)

    spec_x = pl.BlockSpec((1, c, tile), lambda i, j: (i, 0, j))

    # Constant-index weight/bias blocks: single-buffer them once they are big
    # enough for the saved VMEM to matter (negligible at tiny embed_dim).
    single_buffer = weight_bytes > (1 << 20)

    def spec_const(arr):
        nd = arr.ndim
        if single_buffer:
            return pl.BlockSpec(arr.shape, lambda i, j: (0,) * nd,
                                pipeline_mode=pl.Buffered(1))
        return pl.BlockSpec(arr.shape, lambda i, j: (0,) * nd)

    return pl.pallas_call(
        _spectral_mlp_kernel,
        out_shape=jax.ShapeDtypeStruct((b, c, s), x.dtype),
        grid_spec=pltpu.PrefetchScalarGridSpec(
            num_scalar_prefetch=0,
            grid=(b, num_tiles),
            in_specs=[
                spec_x,
                spec_const(params["w1"]), spec_const(params["b1"]),
                spec_const(params["w2"]), spec_const(params["b2"]),
                spec_const(params["w3"]), spec_const(params["b3"]),
            ],
            out_specs=spec_x,
        ),
        compiler_params=pltpu.CompilerParams(
            dimension_semantics=("parallel", "parallel"),
            vmem_limit_bytes=vmem_limit),
    )(x, params["w1"], params["b1"], params["w2"], params["b2"],
      params["w3"], params["b3"])


# --------------------------------------------------------------------------- #
# Parameters (PyTorch Conv2d 1x1 weights stored squeezed as (Cout, Cin)).     #
# --------------------------------------------------------------------------- #
def init_fft_attention_params(key, embed_dim):
    half = embed_dim // 2
    k1, k2, k3, k4, k5, k6 = jax.random.split(key, 6)
    w1 = 0.1 * jax.random.normal(k1, (half, embed_dim), jnp.float32)
    b1 = 0.1 * jax.random.normal(k2, (half, 1), jnp.float32)
    w2 = 0.1 * jax.random.normal(k3, (half, half), jnp.float32)
    b2 = 0.1 * jax.random.normal(k4, (half, 1), jnp.float32)
    w3 = 0.1 * jax.random.normal(k5, (embed_dim, half), jnp.float32)
    b3 = 0.1 * jax.random.normal(k6, (embed_dim, 1), jnp.float32)
    return dict(w1=w1, b1=b1, w2=w2, b2=b2, w3=w3, b3=b3)


# --------------------------------------------------------------------------- #
# Forward pass.                                                               #
# --------------------------------------------------------------------------- #
@jax.jit
def fft_attention(x, params):
    """x: (B, C, H, W) float32, NCHW as in PyTorch."""
    b, c, h, w = x.shape

    # TODO(synk): rfftn/irfftn have no Pallas primitive; computed in plain JAX/XLA.
    ffted = jnp.fft.rfftn(x, axes=(-2, -1), norm="ortho")      # (B,C,H,Wf) c64
    wf = ffted.shape[-1]
    s2 = 2 * h * wf

    # Interleave real/imag along the lane axis in ONE fused pass.  The 1x1-conv
    # MLP mixes channels only, so lane interleaving preserves semantics.
    # TODO(synk): a zero-copy complex<->f32 bitcast would remove this pass, but
    # lax.bitcast_convert_type does not support complex dtypes.
    inter = jnp.stack([jnp.real(ffted), jnp.imag(ffted)], axis=-1)
    inter = inter.astype(jnp.float32).reshape(b, c, s2)

    # Pad lanes to a multiple of 128 (folded into the interleave fusion) so all
    # block stores in the kernel are unmasked, lane-dense vst.
    s_pad = ((s2 + 127) // 128) * 128
    if s_pad != s2:
        inter = jnp.pad(inter, ((0, 0), (0, 0), (0, s_pad - s2)))

    # bf16 matmul inputs once channel count is large enough to matter
    # (v6e/v7x MXU win); elementwise path stays f32 everywhere.
    mm_dtype = jnp.bfloat16 if c >= 256 else jnp.float32
    p = dict(params)
    for k in ("w1", "w2", "w3"):
        p[k] = params[k].astype(mm_dtype)

    out = _spectral_mlp(inter, p)                               # (B, C, s_pad)

    # Un-interleave + repack to complex in one fused pass feeding irfftn.
    out = out[..., :s2].reshape(b, c, h, wf, 2)
    spec = jax.lax.complex(out[..., 0], out[..., 1])
    atten = jnp.fft.irfftn(spec, s=(h, w), axes=(-2, -1),
                           norm="ortho").astype(x.dtype)

    # Final elementwise product left to XLA so it fuses with the irfft output.
    return x * atten


# --------------------------------------------------------------------------- #
# Pure-JAX reference for sanity checking.                                     #
# --------------------------------------------------------------------------- #
def _reference(x, params):
    def mlp(v):  # v: (B, C, H, Wf) real
        t = jnp.einsum("bchw,oc->bohw", v, params["w1"]) + params["b1"][None, :, :, None]
        t = jnp.where(t >= 0, t, NEG_SLOPE * t)
        t = jnp.einsum("bchw,oc->bohw", t, params["w2"]) + params["b2"][None, :, :, None]
        t = jnp.where(t >= 0, t, NEG_SLOPE * t)
        t = jnp.einsum("bchw,oc->bohw", t, params["w3"]) + params["b3"][None, :, :, None]
        return v + t

    h, w = x.shape[-2:]
    ffted = jnp.fft.rfftn(x, axes=(-2, -1), norm="ortho")
    real = mlp(jnp.real(ffted).astype(jnp.float32))
    imag = mlp(jnp.imag(ffted).astype(jnp.float32))
    atten = jnp.fft.irfftn(jax.lax.complex(real, imag), s=(h, w),
                           axes=(-2, -1), norm="ortho")
    return x * atten.astype(x.dtype)


if __name__ == "__main__":
    key = jax.random.PRNGKey(0)
    kx, kp = jax.random.split(key)

    B, C, H, W = 2, 4, 16, 16          # embed_dim = 4
    x = jax.random.normal(kx, (B, C, H, W), jnp.float32)
    params = init_fft_attention_params(kp, C)

    out = jax.block_until_ready(fft_attention(x, params))
    ref = jax.block_until_ready(_reference(x, params))

    assert out.shape == x.shape
    assert jnp.allclose(out, ref, rtol=1e-4, atol=1e-4), "mismatch vs reference"

    print("KERNEL_OK")
</pallas_src>

<mosaic_0001>
module attributes {stable_mosaic.version = 11 : i64} {
  func.func @_spectral_mlp_kernel(%arg0: i32, %arg1: i32, %arg2: memref<1x4x384xf32, #tpu.memory_space<vmem>>, %arg3: memref<2x4xf32, #tpu.memory_space<vmem>>, %arg4: memref<2x1xf32, #tpu.memory_space<vmem>>, %arg5: memref<2x2xf32, #tpu.memory_space<vmem>>, %arg6: memref<2x1xf32, #tpu.memory_space<vmem>>, %arg7: memref<4x2xf32, #tpu.memory_space<vmem>>, %arg8: memref<4x1xf32, #tpu.memory_space<vmem>>, %arg9: memref<1x4x384xf32, #tpu.memory_space<vmem>>) attributes {dimension_semantics = [#tpu.dimension_semantics<parallel>, #tpu.dimension_semantics<parallel>], iteration_bounds = array<i64: 2, 1>, scalar_prefetch = 0 : i64, scratch_operands = 0 : i64, tpu.core_type = #tpu.core_type<tc>, window_params = [{transform_indices = @transform_0, window_bounds = array<i64: 1, 4, 384>}, {pipeline_mode = #tpu.pipeline_mode<synchronous>, transform_indices = @transform_1, window_bounds = array<i64: 2, 4>}, {pipeline_mode = #tpu.pipeline_mode<synchronous>, transform_indices = @transform_2, window_bounds = array<i64: 2, 1>}, {pipeline_mode = #tpu.pipeline_mode<synchronous>, transform_indices = @transform_3, window_bounds = array<i64: 2, 2>}, {pipeline_mode = #tpu.pipeline_mode<synchronous>, transform_indices = @transform_4, window_bounds = array<i64: 2, 1>}, {pipeline_mode = #tpu.pipeline_mode<synchronous>, transform_indices = @transform_5, window_bounds = array<i64: 4, 2>}, {pipeline_mode = #tpu.pipeline_mode<synchronous>, transform_indices = @transform_6, window_bounds = array<i64: 4, 1>}, {transform_indices = @transform_7, window_bounds = array<i64: 1, 4, 384>}]} {
    %c0 = arith.constant 0 : index
    %c0_0 = arith.constant 0 : index
    %c0_1 = arith.constant 0 : index
    %0 = vector.load %arg2[%c0, %c0_0, %c0_1] : memref<1x4x384xf32, #tpu.memory_space<vmem>>, vector<1x4x384xf32>
    %1 = vector.shape_cast %0 : vector<1x4x384xf32> to vector<4x384xf32>
    %c0_2 = arith.constant 0 : index
    %c0_3 = arith.constant 0 : index
    %2 = vector.load %arg3[%c0_2, %c0_3] : memref<2x4xf32, #tpu.memory_space<vmem>>, vector<2x4xf32>
    %c0_4 = arith.constant 0 : index
    %c0_5 = arith.constant 0 : index
    %3 = vector.load %arg5[%c0_4, %c0_5] : memref<2x2xf32, #tpu.memory_space<vmem>>, vector<2x2xf32>
    %c0_6 = arith.constant 0 : index
    %c0_7 = arith.constant 0 : index
    %4 = vector.load %arg7[%c0_6, %c0_7] : memref<4x2xf32, #tpu.memory_space<vmem>>, vector<4x2xf32>
    %c0_8 = arith.constant 0 : index
    %c0_9 = arith.constant 0 : index
    %5 = vector.load %arg4[%c0_8, %c0_9] : memref<2x1xf32, #tpu.memory_space<vmem>>, vector<2x1xf32>
    %c0_10 = arith.constant 0 : index
    %c0_11 = arith.constant 0 : index
    %6 = vector.load %arg6[%c0_10, %c0_11] : memref<2x1xf32, #tpu.memory_space<vmem>>, vector<2x1xf32>
    %c0_12 = arith.constant 0 : index
    %c0_13 = arith.constant 0 : index
    %7 = vector.load %arg8[%c0_12, %c0_13] : memref<4x1xf32, #tpu.memory_space<vmem>>, vector<4x1xf32>
    %cst = arith.constant dense<0.000000e+00> : vector<2x384xf32>
    %8 = tpu.matmul %2, %1, %cst {dimension_numbers = #tpu.dot_dimension_numbers<[1], [0], [0], [1], [0, 0, 1, 1], [], []>} : vector<2x4xf32>, vector<4x384xf32>, vector<2x384xf32> -> vector<2x384xf32>
    %9 = vector.broadcast %5 : vector<2x1xf32> to vector<2x384xf32>
    %10 = arith.addf %8, %9 : vector<2x384xf32>
    %cst_14 = arith.constant 0.000000e+00 : f32
    %11 = vector.broadcast %cst_14 : f32 to vector<2x384xf32>
    %12 = arith.cmpf oge, %10, %11 : vector<2x384xf32>
    %cst_15 = arith.constant 2.000000e-01 : f32
    %13 = vector.broadcast %cst_15 : f32 to vector<2x384xf32>
    %14 = arith.mulf %13, %10 : vector<2x384xf32>
    %15 = arith.select %12, %10, %14 : vector<2x384xi1>, vector<2x384xf32>
    %cst_16 = arith.constant dense<0.000000e+00> : vector<2x384xf32>
    %16 = tpu.matmul %3, %15, %cst_16 {dimension_numbers = #tpu.dot_dimension_numbers<[1], [0], [0], [1], [0, 0, 1, 1], [], []>} : vector<2x2xf32>, vector<2x384xf32>, vector<2x384xf32> -> vector<2x384xf32>
    %17 = vector.broadcast %6 : vector<2x1xf32> to vector<2x384xf32>
    %18 = arith.addf %16, %17 : vector<2x384xf32>
    %cst_17 = arith.constant 0.000000e+00 : f32
    %19 = vector.broadcast %cst_17 : f32 to vector<2x384xf32>
    %20 = arith.cmpf oge, %18, %19 : vector<2x384xf32>
    %cst_18 = arith.constant 2.000000e-01 : f32
    %21 = vector.broadcast %cst_18 : f32 to vector<2x384xf32>
    %22 = arith.mulf %21, %18 : vector<2x384xf32>
    %23 = arith.select %20, %18, %22 : vector<2x384xi1>, vector<2x384xf32>
    %cst_19 = arith.constant dense<0.000000e+00> : vector<4x384xf32>
    %24 = tpu.matmul %4, %23, %cst_19 {dimension_numbers = #tpu.dot_dimension_numbers<[1], [0], [0], [1], [0, 0, 1, 1], [], []>} : vector<4x2xf32>, vector<2x384xf32>, vector<4x384xf32> -> vector<4x384xf32>
    %25 = vector.broadcast %7 : vector<4x1xf32> to vector<4x384xf32>
    %26 = arith.addf %24, %25 : vector<4x384xf32>
    %27 = arith.addf %1, %26 : vector<4x384xf32>
    %c0_20 = arith.constant 0 : index
    %c0_21 = arith.constant 0 : index
    %c0_22 = arith.constant 0 : index
    %28 = vector.load %arg9[%c0_20, %c0_21, %c0_22] : memref<1x4x384xf32, #tpu.memory_space<vmem>>, vector<1x4x384xf32>
    %29 = vector.shape_cast %28 : vector<1x4x384xf32> to vector<4x384xf32>
    %30 = vector.shape_cast %27 : vector<4x384xf32> to vector<1x4x384xf32>
    tpu.vector_store %arg9[%c0_20, %c0_21, %c0_22], %30 {strides = array<i32>} : memref<1x4x384xf32, #tpu.memory_space<vmem>>, vector<1x4x384xf32>,
    return
  }
  func.func @transform_0(%arg0: i32, %arg1: i32) -> (i32, i32, i32) {
    %c0_i32 = arith.constant 0 : i32
    %c0_i32_0 = arith.constant 0 : i32
    return %arg0, %c0_i32, %arg1 : i32, i32, i32
  }
  func.func @transform_1(%arg0: i32, %arg1: i32) -> (i32, i32) {
    %c0_i32 = arith.constant 0 : i32
    %c0_i32_0 = arith.constant 0 : i32
    %c0_i32_1 = arith.constant 0 : i32
    return %c0_i32, %c0_i32_0 : i32, i32
  }
  func.func @transform_2(%arg0: i32, %arg1: i32) -> (i32, i32) {
    %c0_i32 = arith.constant 0 : i32
    %c0_i32_0 = arith.constant 0 : i32
    %c0_i32_1 = arith.constant 0 : i32
    return %c0_i32, %c0_i32_0 : i32, i32
  }
  func.func @transform_3(%arg0: i32, %arg1: i32) -> (i32, i32) {
    %c0_i32 = arith.constant 0 : i32
    %c0_i32_0 = arith.constant 0 : i32
    %c0_i32_1 = arith.constant 0 : i32
    return %c0_i32, %c0_i32_0 : i32, i32
  }
  func.func @transform_4(%arg0: i32, %arg1: i32) -> (i32, i32) {
    %c0_i32 = arith.constant 0 : i32
    %c0_i32_0 = arith.constant 0 : i32
    %c0_i32_1 = arith.constant 0 : i32
    return %c0_i32, %c0_i32_0 : i32, i32
  }
  func.func @transform_5(%arg0: i32, %arg1: i32) -> (i32, i32) {
    %c0_i32 = arith.constant 0 : i32
    %c0_i32_0 = arith.constant 0 : i32
    %c0_i32_1 = arith.constant 0 : i32
    return %c0_i32, %c0_i32_0 : i32, i32
  }
  func.func @transform_6(%arg0: i32, %arg1: i32) -> (i32, i32) {
    %c0_i32 = arith.constant 0 : i32
    %c0_i32_0 = arith.constant 0 : i32
    %c0_i32_1 = arith.constant 0 : i32
    return %c0_i32, %c0_i32_0 : i32, i32
  }
  func.func @transform_7(%arg0: i32, %arg1: i32) -> (i32, i32, i32) {
    %c0_i32 = arith.constant 0 : i32
    %c0_i32_0 = arith.constant 0 : i32
    return %arg0, %c0_i32, %arg1 : i32, i32, i32
  }
}

</mosaic_0001>

<llo_original>
// kernel: reverse.1
$region0: #{reverse.1}
  %s0 = inlined_call_operand.vmem [shape: f32[2,4,16,7], index: 0, kind: input, shape index: {}]
  %s1 = inlined_call_operand.vmem [shape: f32[2,4,16,7], index: 1, kind: output, shape index: {}]
  $region1: #{reverse.1} parent=0
    #allocation0 [shape = 'u8[65536]{0}', space=vmem, size = 0x10000, scoped, tag = 'operand span for operand 0']
    #allocation1 [shape = 'u8[32768]{0}', space=vmem, size = 0x8000, scoped, tag = 'operand span for operand 1']
    %s2 = scalar_lea.vmem [#allocation0], 8
    // Predicated region
    $region2: #{reverse.1} parent=1 // pred_check
      _
    $region3: #{reverse.1} parent=1 // pred_check_branch
      %4 = sbr.rel (0) target = $region5
    $region4: #{reverse.1} parent=1 // pred_region
      // Predicated region
      $region6: #{reverse.1} parent=4 // pred_check
        _
      $region7: #{reverse.1} parent=4 // pred_check_branch
        %6 = sbr.rel (0) target = $region9
      $region8: #{reverse.1} parent=4 // pred_region
        // Predicated region
        $region21: #{reverse.1} parent=8 // pred_check
          _
        $region22: #{reverse.1} parent=8 // pred_check_branch
          %36 = sbr.rel (0) target = $region24
        $region23: #{reverse.1} parent=8 // pred_region
          loop: start=0, step=1, limit=1
          $region25: #{reverse.1} parent=23 // loop_pre_header
            _
          $region26: #{reverse.1} parent=23 // loop_header
            %s38 = sphi 0, %s42
            %p39 = scmp.ge.s32.totalorder %s38, 1
            %s43 = sphi %s0, %s0
            %s44 = sphi %s2, %s2
          $region27: #{reverse.1} parent=23 // loop_header_branch
            %41 = sbr.rel (%p39) target = $region31
          $region28: #{reverse.1} parent=23 // loop_body
            %v45 = vld [vmem:[%s43] sm:$0xff]
            %46 = vst [vmem:[%s44] sm:$0xff] %v45
            %v47 = vld [vmem:[%s43 + $0x8] sm:$0xff]
            %48 = vst [vmem:[%s44 + $0x10] sm:$0xff] %v47
            %v49 = vld [vmem:[%s43 + $0x10] sm:$0xff]
            %50 = vst [vmem:[%s44 + $0x20] sm:$0xff] %v49
            %v51 = vld [vmem:[%s43 + $0x18] sm:$0xff]
            %52 = vst [vmem:[%s44 + $0x30] sm:$0xff] %v51
            %v53 = vld [vmem:[%s43 + $0x20] sm:$0xff]
            %54 = vst [vmem:[%s44 + $0x40] sm:$0xff] %v53
            %v55 = vld [vmem:[%s43 + $0x28] sm:$0xff]
            %56 = vst [vmem:[%s44 + $0x50] sm:$0xff] %v55
            %v57 = vld [vmem:[%s43 + $0x30] sm:$0xff]
            %58 = vst [vmem:[%s44 + $0x60] sm:$0xff] %v57
            %v59 = vld [vmem:[%s43 + $0x38] sm:$0xff]
            %60 = vst [vmem:[%s44 + $0x70] sm:$0xff] %v59
          $region29: #{reverse.1} parent=23 // loop_footer
            %s42 = sadd.s32 1, %s38
          $region30: #{reverse.1} parent=23 // loop_footer_branch
            %37 = sbr.rel target = $region26
          $region31: #{reverse.1} parent=23 // loop_exit
            _
        $region24: #{reverse.1} parent=8 // pred_fallthru
          _
        // Predicated region
        $region32: #{reverse.1} parent=8 // pred_check
          _
        $region33: #{reverse.1} parent=8 // pred_check_branch
          %62 = sbr.rel target = $region35
        $region34: #{reverse.1} parent=8 // pred_region
          _
        $region35: #{reverse.1} parent=8 // pred_fallthru
          _
      $region9: #{reverse.1} parent=4 // pred_fallthru
        _
      // Predicated region
      $region10: #{reverse.1} parent=4 // pred_check
        _
      $region11: #{reverse.1} parent=4 // pred_check_branch
        %8 = sbr.rel target = $region13
      $region12: #{reverse.1} parent=4 // pred_region
        %s10 = ssub.s32 256, 1
        loop: start=0, step=1, limit=1
        $region14: #{reverse.1} parent=12 // loop_pre_header
          _
        $region15: #{reverse.1} parent=12 // loop_header
          %s12 = sphi 0, %s16
          %p13 = scmp.ge.s32.totalorder %s12, 1
          %s17 = sphi %s0, %s0
          %s18 = sphi %s2, %s2
        $region16: #{reverse.1} parent=12 // loop_header_branch
          %15 = sbr.rel (%p13) target = $region20
        $region17: #{reverse.1} parent=12 // loop_body
          %v19 = vld [vmem:[%s17] sm:%s10]
          %20 = vst [vmem:[%s18] sm:%s10] %v19
          %v21 = vld [vmem:[%s17 + $0x8] sm:%s10]
          %22 = vst [vmem:[%s18 + $0x10] sm:%s10] %v21
          %v23 = vld [vmem:[%s17 + $0x10] sm:%s10]
          %24 = vst [vmem:[%s18 + $0x20] sm:%s10] %v23
          %v25 = vld [vmem:[%s17 + $0x18] sm:%s10]
          %26 = vst [vmem:[%s18 + $0x30] sm:%s10] %v25
          %v27 = vld [vmem:[%s17 + $0x20] sm:%s10]
          %28 = vst [vmem:[%s18 + $0x40] sm:%s10] %v27
          %v29 = vld [vmem:[%s17 + $0x28] sm:%s10]
          %30 = vst [vmem:[%s18 + $0x50] sm:%s10] %v29
          %v31 = vld [vmem:[%s17 + $0x30] sm:%s10]
          %32 = vst [vmem:[%s18 + $0x60] sm:%s10] %v31
          %v33 = vld [vmem:[%s17 + $0x38] sm:%s10]
          %34 = vst [vmem:[%s18 + $0x70] sm:%s10] %v33
        $region18: #{reverse.1} parent=12 // loop_footer
          %s16 = sadd.s32 1, %s12
        $region19: #{reverse.1} parent=12 // loop_footer_branch
          %11 = sbr.rel target = $region15
        $region20: #{reverse.1} parent=12 // loop_exit
          _
      $region13: #{reverse.1} parent=4 // pred_fallthru
        _
    $region5: #{reverse.1} parent=1 // pred_fallthru
      _
    %63 = vnop
    %s64 = scalar_lea.vmem [#allocation0], 7
    %v65 = vld [vmem:[%s64] ss:$-1 sm:$0xff]
    %v66 = vrot.slane %v65, 1
    %67 = vst [vmem:[#allocation1] sm:$0xff] %v66
    %s68 = scalar_lea.vmem [#allocation0], 8
    %s69 = scalar_lea.vmem %s68, 7 [#allocation0]
    %v70 = vld [vmem:[%s69] ss:$-1 sm:$0xff]
    %v71 = vrot.slane %v70, 1
    %v72 = vlaneseq
    %v73 = vshrl.u32 %v72, 7
    %vm74 = vcmp.lt.s32.totalorder %v73, 7
    %75 = vst.msk [vmem:[#allocation1] sm:$0xff] %vm74, %v71
    %s76 = scalar_lea.vmem [#allocation1], 8
    %s77 = scalar_lea.vmem [#allocation0], 16
    %s78 = scalar_lea.vmem %s77, 7 [#allocation0]
    %v79 = vld [vmem:[%s78] ss:$-1 sm:$0xff]
    %v80 = vrot.slane %v79, 1
    %81 = vst [vmem:[%s76] sm:$0xff] %v80
    %s82 = scalar_lea.vmem %s77, 8 [#allocation0]
    %s83 = scalar_lea.vmem %s82, 7 [#allocation0]
    %v84 = vld [vmem:[%s83] ss:$-1 sm:$0xff]
    %v85 = vrot.slane %v84, 1
    %v86 = vlaneseq
    %v87 = vshrl.u32 %v86, 7
    %vm88 = vcmp.lt.s32.totalorder %v87, 7
    %89 = vst.msk [vmem:[%s76] sm:$0xff] %vm88, %v85
    %s90 = scalar_lea.vmem [#allocation1], 16
    %s91 = scalar_lea.vmem [#allocation0], 32
    %s92 = scalar_lea.vmem %s91, 7 [#allocation0]
    %v93 = vld [vmem:[%s92] ss:$-1 sm:$0xff]
    %v94 = vrot.slane %v93, 1
    %95 = vst [vmem:[%s90] sm:$0xff] %v94
    %s96 = scalar_lea.vmem %s91, 8 [#allocation0]
    %s97 = scalar_lea.vmem %s96, 7 [#allocation0]
    %v98 = vld [vmem:[%s97] ss:$-1 sm:$0xff]
    %v99 = vrot.slane %v98, 1
    %v100 = vlaneseq
    %v101 = vshrl.u32 %v100, 7
    %vm102 = vcmp.lt.s32.totalorder %v101, 7
    %103 = vst.msk [vmem:[%s90] sm:$0xff] %vm102, %v99
    %s104 = scalar_lea.vmem [#allocation1], 24
    %s105 = scalar_lea.vmem [#allocation0], 48
    %s106 = scalar_lea.vmem %s105, 7 [#allocation0]
    %v107 = vld [vmem:[%s106] ss:$-1 sm:$0xff]
    %v108 = vrot.slane %v107, 1
    %109 = vst [vmem:[%s104] sm:$0xff] %v108
    %s110 = scalar_lea.vmem %s105, 8 [#allocation0]
    %s111 = scalar_lea.vmem %s110, 7 [#allocation0]
    %v112 = vld [vmem:[%s111] ss:$-1 sm:$0xff]
    %v113 = vrot.slane %v112, 1
    %v114 = vlaneseq
    %v115 = vshrl.u32 %v114, 7
    %vm116 = vcmp.lt.s32.totalorder %v115, 7
    %117 = vst.msk [vmem:[%s104] sm:$0xff] %vm116, %v113
    %s118 = scalar_lea.vmem [#allocation1], 32
    %s119 = scalar_lea.vmem [#allocation0], 64
    %s120 = scalar_lea.vmem %s119, 7 [#allocation0]
    %v121 = vld [vmem:[%s120] ss:$-1 sm:$0xff]
    %v122 = vrot.slane %v121, 1
    %123 = vst [vmem:[%s118] sm:$0xff] %v122
    %s124 = scalar_lea.vmem %s119, 8 [#allocation0]
    %s125 = scalar_lea.vmem %s124, 7 [#allocation0]
    %v126 = vld [vmem:[%s125] ss:$-1 sm:$0xff]
    %v127 = vrot.slane %v126, 1
    %v128 = vlaneseq
    %v129 = vshrl.u32 %v128, 7
    %vm130 = vcmp.lt.s32.totalorder %v129, 7
    %131 = vst.msk [vmem:[%s118] sm:$0xff] %vm130, %v127
    %s132 = scalar_lea.vmem [#allocation1], 40
    %s133 = scalar_lea.vmem [#allocation0], 80
    %s134 = scalar_lea.vmem %s133, 7 [#allocation0]
    %v135 = vld [vmem:[%s134] ss:$-1 sm:$0xff]
    %v136 = vrot.slane %v135, 1
    %137 = vst [vmem:[%s132] sm:$0xff] %v136
    %s138 = scalar_lea.vmem %s133, 8 [#allocation0]
    %s139 = scalar_lea.vmem %s138, 7 [#allocation0]
    %v140 = vld [vmem:[%s139] ss:$-1 sm:$0xff]
    %v141 = vrot.slane %v140, 1
    %v142 = vlaneseq
    %v143 = vshrl.u32 %v142, 7
    %vm144 = vcmp.lt.s32.totalorder %v143, 7
    %145 = vst.msk [vmem:[%s132] sm:$0xff] %vm144, %v141
    %s146 = scalar_lea.vmem [#allocation1], 48
    %s147 = scalar_lea.vmem [#allocation0], 96
    %s148 = scalar_lea.vmem %s147, 7 [#allocation0]
    %v149 = vld [vmem:[%s148] ss:$-1 sm:$0xff]
    %v150 = vrot.slane %v149, 1
    %151 = vst [vmem:[%s146] sm:$0xff] %v150
    %s152 = scalar_lea.vmem %s147, 8 [#allocation0]
    %s153 = scalar_lea.vmem %s152, 7 [#allocation0]
    %v154 = vld [vmem:[%s153] ss:$-1 sm:$0xff]
    %v155 = vrot.slane %v154, 1
    %v156 = vlaneseq
    %v157 = vshrl.u32 %v156, 7
    %vm158 = vcmp.lt.s32.totalorder %v157, 7
    %159 = vst.msk [vmem:[%s146] sm:$0xff] %vm158, %v155
    %s160 = scalar_lea.vmem [#allocation1], 56
    %s161 = scalar_lea.vmem [#allocation0], 112
    %s162 = scalar_lea.vmem %s161, 7 [#allocation0]
    %v163 = vld [vmem:[%s162] ss:$-1 sm:$0xff]
    %v164 = vrot.slane %v163, 1
    %165 = vst [vmem:[%s160] sm:$0xff] %v164
    %s166 = scalar_lea.vmem %s161, 8 [#allocation0]
    %s167 = scalar_lea.vmem %s166, 7 [#allocation0]
    %v168 = vld [vmem:[%s167] ss:$-1 sm:$0xff]
    %v169 = vrot.slane %v168, 1
    %v170 = vlaneseq
    %v171 = vshrl.u32 %v170, 7
    %vm172 = vcmp.lt.s32.totalorder %v171, 7
    %173 = vst.msk [vmem:[%s160] sm:$0xff] %vm172, %v169
    // Predicated region
    $region36: #{reverse.1} parent=1 // pred_check
      _
    $region37: #{reverse.1} parent=1 // pred_check_branch
      %175 = sbr.rel (0) target = $region39
    $region38: #{reverse.1} parent=1 // pred_region
      // Predicated region
      $region40: #{reverse.1} parent=38 // pred_check
        _
      $region41: #{reverse.1} parent=38 // pred_check_branch
        %177 = sbr.rel (0) target = $region43
      $region42: #{reverse.1} parent=38 // pred_region
        // Predicated region
        $region55: #{reverse.1} parent=42 // pred_check
          _
        $region56: #{reverse.1} parent=42 // pred_check_branch
          %207 = sbr.rel (0) target = $region58
        $region57: #{reverse.1} parent=42 // pred_region
          loop: start=0, step=1, limit=1
          $region59: #{reverse.1} parent=57 // loop_pre_header
            _
          $region60: #{reverse.1} parent=57 // loop_header
            %s209 = sphi 0, %s213
            %p210 = scmp.ge.s32.totalorder %s209, 1
            %s214 = sphi [#allocation1], [#allocation1]
            %s215 = sphi %s1, %s1
          $region61: #{reverse.1} parent=57 // loop_header_branch
            %212 = sbr.rel (%p210) target = $region65
          $region62: #{reverse.1} parent=57 // loop_body
            %v216 = vld [vmem:[%s214] sm:$0xff]
            %217 = vst [vmem:[%s215] sm:$0xff] %v216
            %v218 = vld [vmem:[%s214 + $0x8] sm:$0xff]
            %219 = vst [vmem:[%s215 + $0x8] sm:$0xff] %v218
            %v220 = vld [vmem:[%s214 + $0x10] sm:$0xff]
            %221 = vst [vmem:[%s215 + $0x10] sm:$0xff] %v220
            %v222 = vld [vmem:[%s214 + $0x18] sm:$0xff]
            %223 = vst [vmem:[%s215 + $0x18] sm:$0xff] %v222
            %v224 = vld [vmem:[%s214 + $0x20] sm:$0xff]
            %225 = vst [vmem:[%s215 + $0x20] sm:$0xff] %v224
            %v226 = vld [vmem:[%s214 + $0x28] sm:$0xff]
            %227 = vst [vmem:[%s215 + $0x28] sm:$0xff] %v226
            %v228 = vld [vmem:[%s214 + $0x30] sm:$0xff]
            %229 = vst [vmem:[%s215 + $0x30] sm:$0xff] %v228
            %v230 = vld [vmem:[%s214 + $0x38] sm:$0xff]
            %231 = vst [vmem:[%s215 + $0x38] sm:$0xff] %v230
          $region63: #{reverse.1} parent=57 // loop_footer
            %s213 = sadd.s32 1, %s209
          $region64: #{reverse.1} parent=57 // loop_footer_branch
            %208 = sbr.rel target = $region60
          $region65: #{reverse.1} parent=57 // loop_exit
            _
        $region58: #{reverse.1} parent=42 // pred_fallthru
          _
        // Predicated region
        $region66: #{reverse.1} parent=42 // pred_check
          _
        $region67: #{reverse.1} parent=42 // pred_check_branch
          %233 = sbr.rel target = $region69
        $region68: #{reverse.1} parent=42 // pred_region
          _
        $region69: #{reverse.1} parent=42 // pred_fallthru
          _
      $region43: #{reverse.1} parent=38 // pred_fallthru
        _
      // Predicated region
      $region44: #{reverse.1} parent=38 // pred_check
        _
      $region45: #{reverse.1} parent=38 // pred_check_branch
        %179 = sbr.rel target = $region47
      $region46: #{reverse.1} parent=38 // pred_region
        %s181 = ssub.s32 256, 1
        loop: start=0, step=1, limit=1
        $region48: #{reverse.1} parent=46 // loop_pre_header
          _
        $region49: #{reverse.1} parent=46 // loop_header
          %s183 = sphi 0, %s187
          %p184 = scmp.ge.s32.totalorder %s183, 1
          %s188 = sphi [#allocation1], [#allocation1]
          %s189 = sphi %s1, %s1
        $region50: #{reverse.1} parent=46 // loop_header_branch
          %186 = sbr.rel (%p184) target = $region54
        $region51: #{reverse.1} parent=46 // loop_body
          %v190 = vld [vmem:[%s188] sm:%s181]
          %191 = vst [vmem:[%s189] sm:%s181] %v190
          %v192 = vld [vmem:[%s188 + $0x8] sm:%s181]
          %193 = vst [vmem:[%s189 + $0x8] sm:%s181] %v192
          %v194 = vld [vmem:[%s188 + $0x10] sm:%s181]
          %195 = vst [vmem:[%s189 + $0x10] sm:%s181] %v194
          %v196 = vld [vmem:[%s188 + $0x18] sm:%s181]
          %197 = vst [vmem:[%s189 + $0x18] sm:%s181] %v196
          %v198 = vld [vmem:[%s188 + $0x20] sm:%s181]
          %199 = vst [vmem:[%s189 + $0x20] sm:%s181] %v198
          %v200 = vld [vmem:[%s188 + $0x28] sm:%s181]
          %201 = vst [vmem:[%s189 + $0x28] sm:%s181] %v200
          %v202 = vld [vmem:[%s188 + $0x30] sm:%s181]
          %203 = vst [vmem:[%s189 + $0x30] sm:%s181] %v202
          %v204 = vld [vmem:[%s188 + $0x38] sm:%s181]
          %205 = vst [vmem:[%s189 + $0x38] sm:%s181] %v204
        $region52: #{reverse.1} parent=46 // loop_footer
          %s187 = sadd.s32 1, %s183
        $region53: #{reverse.1} parent=46 // loop_footer_branch
          %182 = sbr.rel target = $region49
        $region54: #{reverse.1} parent=46 // loop_exit
          _
      $region47: #{reverse.1} parent=38 // pred_fallthru
        _
    $region39: #{reverse.1} parent=1 // pred_fallthru
      _
    %234 = vnop

// kernel: fft_attention.1
$region0: #{fft_attention.1}
  #allocation0 [shape = 'u32[]', space=smem, size = 0x4, offset = 0x4, fixed_abs, tag = 'smem constant byte address 0x4 - core index']
  #allocation1 [shape = 'u32[144,128]{1,0:T(1,128)}', space=vmem, size = 0x12000, scoped, tag = 'internal scratch']
  %s0 = inlined_call_operand.vmem [shape: f32[2,4,384], index: 0, kind: input, shape index: {}]
  %s1 = inlined_call_operand.vmem [shape: f32[2,4], index: 1, kind: input, shape index: {}]
  %s2 = inlined_call_operand.vmem [shape: f32[2,1], index: 2, kind: input, shape index: {}]
  %s3 = inlined_call_operand.vmem [shape: f32[2,2], index: 3, kind: input, shape index: {}]
  %s4 = inlined_call_operand.vmem [shape: f32[2,1], index: 4, kind: input, shape index: {}]
  %s5 = inlined_call_operand.vmem [shape: f32[4,2], index: 5, kind: input, shape index: {}]
  %s6 = inlined_call_operand.vmem [shape: f32[4,1], index: 6, kind: input, shape index: {}]
  %s7 = inlined_call_operand.vmem [shape: f32[2,4,384], index: 7, kind: output, shape index: {}]
  %s8 = sld [smem:[#allocation0]]
  $region61: #{fft_attention.1} parent=0
    _
  %s10 = ssub.s32 1, %s8
  %s11 = scalar_select 0, %s10, %s8
  loop: start=0, step=1, limit=4
  $region2: #{fft_attention.1} parent=0 // loop_pre_header
    _
  $region3: #{fft_attention.1} parent=0 // loop_header
    %s13 = sphi 0, %s17
    %p14 = scmp.ge.s32.totalorder %s13, 4
    %s20 = sphi 0, %s32
    %s21 = sphi 0, %s28
    %s22 = sphi 0, %s20
    %s23 = sphi 0, %s21
    %s24 = sphi 0, %s22
    %s25 = sphi 0, %s23
    %s37 = sphi 0, %s39
    %s40 = sphi 0, %s37
    %s41 = sphi 0, %s40
    %s57 = sphi 0, %s41
    %s61 = sphi 0, %s61
    %s63 = sphi 0, %s61
    %s64 = sphi 0, %s63
    %s78 = sphi 0, %s64
    %s82 = sphi 0, %s82
    %s84 = sphi 0, %s82
    %s85 = sphi 0, %s84
    %s99 = sphi 0, %s85
    %s103 = sphi 0, %s103
    %s105 = sphi 0, %s103
    %s106 = sphi 0, %s105
    %s120 = sphi 0, %s106
    %s124 = sphi 0, %s124
    %s126 = sphi 0, %s124
    %s127 = sphi 0, %s126
    %s141 = sphi 0, %s127
    %s145 = sphi 0, %s145
    %s147 = sphi 0, %s145
    %s148 = sphi 0, %s147
    %s162 = sphi 0, %s148
    %s166 = sphi 0, %s166
    %s168 = sphi 0, %s166
    %s169 = sphi 0, %s168
    %s183 = sphi 0, %s169
    %s191 = sphi 0, %s193
    %s194 = sphi 0, %s191
    %s195 = sphi 0, %s194
    %s211 = sphi 0, %s195
  $region4: #{fft_attention.1} parent=0 // loop_header_branch
    %16 = sbr.rel (%p14) target = $region8
  $region5: #{fft_attention.1} parent=0 // loop_body
    %s18 = ssub.s32 %s13, 1
    %s19 = ssub.s32 %s13, 2
    %s26 = sadd.s32 1, %s21
    %p27 = scmp.ge.s32.totalorder %s26, 1
    %s28 = scalar_select %p27, 0, %s26
    %s29 = sadd.s32 1, %s20
    %s30 = scalar_select %p27, %s29, %s20
    %p31 = scmp.ge.s32.totalorder %s30, 2
    %s32 = scalar_select %p31, 0, %s30
    %s33 = ssub.s32 %s20, %s32
    %s34 = ssub.s32 %s21, %s28
    %s35 = sor.u32 %s33, %s34
    %p36 = scmp.eq.s32.totalorder %s35, 0
    %s38 = sadd.s32 %s37, 1
    %s39 = scalar_select %p36, %s37, %s38
    %p42 = pneg %p36
    %p43 = scmp.eq.s32.totalorder %s13, 1
    %p44 = por %p42, %p43
    %p45 = scmp.ne.s32.totalorder %s37, %s40
    %p46 = scmp.eq.s32.totalorder %s13, 0
    %p47 = por %p45, %p46
    %p48 = scmp.ne.s32.totalorder %s37, %s40
    %p49 = scmp.eq.s32.totalorder %s18, 1
    %p50 = por %p48, %p49
    %p51 = scmp.ne.s32.totalorder %s40, %s41
    %p52 = scmp.eq.s32.totalorder %s18, 0
    %p53 = por %p51, %p52
    %p54 = scmp.ne.s32.totalorder %s40, %s41
    %p55 = scmp.eq.s32.totalorder %s19, 1
    %p56 = por %p54, %p55
    %p58 = scmp.ne.s32.totalorder %s41, %s57
    %p59 = scmp.eq.s32.totalorder %s19, 0
    %p60 = por %p58, %p59
    %s62 = sadd.s32 %s61, 1
    %p65 = scmp.eq.s32.totalorder %s13, 1
    %p66 = scmp.ne.s32.totalorder %s61, %s63
    %p67 = scmp.eq.s32.totalorder %s13, 0
    %p68 = por %p66, %p67
    %p69 = scmp.ne.s32.totalorder %s61, %s63
    %p70 = scmp.eq.s32.totalorder %s18, 1
    %p71 = por %p69, %p70
    %p72 = scmp.ne.s32.totalorder %s63, %s64
    %p73 = scmp.eq.s32.totalorder %s18, 0
    %p74 = por %p72, %p73
    %p75 = scmp.ne.s32.totalorder %s63, %s64
    %p76 = scmp.eq.s32.totalorder %s19, 1
    %p77 = por %p75, %p76
    %p79 = scmp.ne.s32.totalorder %s64, %s78
    %p80 = scmp.eq.s32.totalorder %s19, 0
    %p81 = por %p79, %p80
    %s83 = sadd.s32 %s82, 1
    %p86 = scmp.eq.s32.totalorder %s13, 1
    %p87 = scmp.ne.s32.totalorder %s82, %s84
    %p88 = scmp.eq.s32.totalorder %s13, 0
    %p89 = por %p87, %p88
    %p90 = scmp.ne.s32.totalorder %s82, %s84
    %p91 = scmp.eq.s32.totalorder %s18, 1
    %p92 = por %p90, %p91
    %p93 = scmp.ne.s32.totalorder %s84, %s85
    %p94 = scmp.eq.s32.totalorder %s18, 0
    %p95 = por %p93, %p94
    %p96 = scmp.ne.s32.totalorder %s84, %s85
    %p97 = scmp.eq.s32.totalorder %s19, 1
    %p98 = por %p96, %p97
    %p100 = scmp.ne.s32.totalorder %s85, %s99
    %p101 = scmp.eq.s32.totalorder %s19, 0
    %p102 = por %p100, %p101
    %s104 = sadd.s32 %s103, 1
    %p107 = scmp.eq.s32.totalorder %s13, 1
    %p108 = scmp.ne.s32.totalorder %s103, %s105
    %p109 = scmp.eq.s32.totalorder %s13, 0
    %p110 = por %p108, %p109
    %p111 = scmp.ne.s32.totalorder %s103, %s105
    %p112 = scmp.eq.s32.totalorder %s18, 1
    %p113 = por %p111, %p112
    %p114 = scmp.ne.s32.totalorder %s105, %s106
    %p115 = scmp.eq.s32.totalorder %s18, 0
    %p116 = por %p114, %p115
    %p117 = scmp.ne.s32.totalorder %s105, %s106
    %p118 = scmp.eq.s32.totalorder %s19, 1
    %p119 = por %p117, %p118
    %p121 = scmp.ne.s32.totalorder %s106, %s120
    %p122 = scmp.eq.s32.totalorder %s19, 0
    %p123 = por %p121, %p122
    %s125 = sadd.s32 %s124, 1
    %p128 = scmp.eq.s32.totalorder %s13, 1
    %p129 = scmp.ne.s32.totalorder %s124, %s126
    %p130 = scmp.eq.s32.totalorder %s13, 0
    %p131 = por %p129, %p130
    %p132 = scmp.ne.s32.totalorder %s124, %s126
    %p133 = scmp.eq.s32.totalorder %s18, 1
    %p134 = por %p132, %p133
    %p135 = scmp.ne.s32.totalorder %s126, %s127
    %p136 = scmp.eq.s32.totalorder %s18, 0
    %p137 = por %p135, %p136
    %p138 = scmp.ne.s32.totalorder %s126, %s127
    %p139 = scmp.eq.s32.totalorder %s19, 1
    %p140 = por %p138, %p139
    %p142 = scmp.ne.s32.totalorder %s127, %s141
    %p143 = scmp.eq.s32.totalorder %s19, 0
    %p144 = por %p142, %p143
    %s146 = sadd.s32 %s145, 1
    %p149 = scmp.eq.s32.totalorder %s13, 1
    %p150 = scmp.ne.s32.totalorder %s145, %s147
    %p151 = scmp.eq.s32.totalorder %s13, 0
    %p152 = por %p150, %p151
    %p153 = scmp.ne.s32.totalorder %s145, %s147
    %p154 = scmp.eq.s32.totalorder %s18, 1
    %p155 = por %p153, %p154
    %p156 = scmp.ne.s32.totalorder %s147, %s148
    %p157 = scmp.eq.s32.totalorder %s18, 0
    %p158 = por %p156, %p157
    %p159 = scmp.ne.s32.totalorder %s147, %s148
    %p160 = scmp.eq.s32.totalorder %s19, 1
    %p161 = por %p159, %p160
    %p163 = scmp.ne.s32.totalorder %s148, %s162
    %p164 = scmp.eq.s32.totalorder %s19, 0
    %p165 = por %p163, %p164
    %s167 = sadd.s32 %s166, 1
    %p170 = scmp.eq.s32.totalorder %s13, 1
    %p171 = scmp.ne.s32.totalorder %s166, %s168
    %p172 = scmp.eq.s32.totalorder %s13, 0
    %p173 = por %p171, %p172
    %p174 = scmp.ne.s32.totalorder %s166, %s168
    %p175 = scmp.eq.s32.totalorder %s18, 1
    %p176 = por %p174, %p175
    %p177 = scmp.ne.s32.totalorder %s168, %s169
    %p178 = scmp.eq.s32.totalorder %s18, 0
    %p179 = por %p177, %p178
    %p180 = scmp.ne.s32.totalorder %s168, %s169
    %p181 = scmp.eq.s32.totalorder %s19, 1
    %p182 = por %p180, %p181
    %p184 = scmp.ne.s32.totalorder %s169, %s183
    %p185 = scmp.eq.s32.totalorder %s19, 0
    %p186 = por %p184, %p185
    %s187 = ssub.s32 %s20, %s32
    %s188 = ssub.s32 %s21, %s28
    %s189 = sor.u32 %s187, %s188
    %p190 = scmp.eq.s32.totalorder %s189, 0
    %s192 = sadd.s32 %s191, 1
    %s193 = scalar_select %p190, %s191, %s192
    %p196 = pneg %p190
    %p197 = scmp.eq.s32.totalorder %s13, 1
    %p198 = por %p196, %p197
    %p199 = scmp.ne.s32.totalorder %s191, %s194
    %p200 = scmp.eq.s32.totalorder %s13, 0
    %p201 = por %p199, %p200
    %p202 = scmp.ne.s32.totalorder %s191, %s194
    %p203 = scmp.eq.s32.totalorder %s18, 1
    %p204 = por %p202, %p203
    %p205 = scmp.ne.s32.totalorder %s194, %s195
    %p206 = scmp.eq.s32.totalorder %s18, 0
    %p207 = por %p205, %p206
    %p208 = scmp.ne.s32.totalorder %s194, %s195
    %p209 = scmp.eq.s32.totalorder %s19, 1
    %p210 = por %p208, %p209
    %p212 = scmp.ne.s32.totalorder %s195, %s211
    %p213 = scmp.eq.s32.totalorder %s19, 0
    %p214 = por %p212, %p213
    %p215 = scmp.le.s32.totalorder 1, %s13
    %p216 = scmp.lt.s32.totalorder %s13, 3
    %p217 = pnand %p215, %p216
    %p218 = pneg %p217
    // Predicated region
    $region9: #{fft_attention.1} parent=5 // pred_check
      _
    $region10: #{fft_attention.1} parent=5 // pred_check_branch
      %220 = sbr.rel (%p217) target = $region12
    $region11: #{fft_attention.1} parent=5 // pred_region
      %s221 = ssub.s32 %s13, 1
      // Predicated region
      $region13: #{fft_attention.1} parent=11 // pred_check
        %p222 = pneg %p74
      $region14: #{fft_attention.1} parent=11 // pred_check_branch
        %224 = sbr.rel (%p222) target = $region16
      $region15: #{fft_attention.1} parent=11 // pred_region
        _
      $region16: #{fft_attention.1} parent=11 // pred_fallthru
        _
      // Predicated region
      $region17: #{fft_attention.1} parent=11 // pred_check
        %p225 = pneg %p95
      $region18: #{fft_attention.1} parent=11 // pred_check_branch
        %227 = sbr.rel (%p225) target = $region20
      $region19: #{fft_attention.1} parent=11 // pred_region
        _
      $region20: #{fft_attention.1} parent=11 // pred_fallthru
        _
      // Predicated region
      $region21: #{fft_attention.1} parent=11 // pred_check
        %p228 = pneg %p116
      $region22: #{fft_attention.1} parent=11 // pred_check_branch
        %230 = sbr.rel (%p228) target = $region24
      $region23: #{fft_attention.1} parent=11 // pred_region
        _
      $region24: #{fft_attention.1} parent=11 // pred_fallthru
        _
      // Predicated region
      $region25: #{fft_attention.1} parent=11 // pred_check
        %p231 = pneg %p137
      $region26: #{fft_attention.1} parent=11 // pred_check_branch
        %233 = sbr.rel (%p231) target = $region28
      $region27: #{fft_attention.1} parent=11 // pred_region
        _
      $region28: #{fft_attention.1} parent=11 // pred_fallthru
        _
      // Predicated region
      $region29: #{fft_attention.1} parent=11 // pred_check
        %p234 = pneg %p158
      $region30: #{fft_attention.1} parent=11 // pred_check_branch
        %236 = sbr.rel (%p234) target = $region32
      $region31: #{fft_attention.1} parent=11 // pred_region
        _
      $region32: #{fft_attention.1} parent=11 // pred_fallthru
        _
      // Predicated region
      $region33: #{fft_attention.1} parent=11 // pred_check
        %p237 = pneg %p179
      $region34: #{fft_attention.1} parent=11 // pred_check_branch
        %239 = sbr.rel (%p237) target = $region36
      $region35: #{fft_attention.1} parent=11 // pred_region
        _
      $region36: #{fft_attention.1} parent=11 // pred_fallthru
        _
    $region12: #{fft_attention.1} parent=5 // pred_fallthru
      _
    %p240 = scmp.lt.s32.totalorder %s13, 2
    // Predicated region
    $region37: #{fft_attention.1} parent=5 // pred_check
      %p241 = pneg %p240
    $region38: #{fft_attention.1} parent=5 // pred_check_branch
      %243 = sbr.rel (%p241) target = $region40
    $region39: #{fft_attention.1} parent=5 // pred_region
      // Predicated region
      $region41: #{fft_attention.1} parent=39 // pred_check
        %p244 = pneg %p47
      $region42: #{fft_attention.1} parent=39 // pred_check_branch
        %246 = sbr.rel (%p244) target = $region44
      $region43: #{fft_attention.1} parent=39 // pred_region
        %s247 = smul.u32 3, %s21
        %p248 = scmp.lt.s32.totalorder %s20, 1
        %s249 = scalar_select %p248, %s20, 1
        %p250 = scmp.lt.s32.totalorder %s247, 2
        %s251 = scalar_select %p250, %s247, 2
        %s252 = smul.addr %s249, 3
        %s253 = sadd.s32 %s251, %s252
        %s254 = smul.addr %s253, 4
        %s255 = scalar_lea.vmem %s0, %s254
        %s256 = smul.u32 3, %s21
      $region44: #{fft_attention.1} parent=39 // pred_fallthru
        _
    $region40: #{fft_attention.1} parent=5 // pred_fallthru
      _
    %p257 = scmp.le.s32.totalorder 1, %s13
    %p258 = scmp.lt.s32.totalorder %s13, 3
    %p259 = pnand %p257, %p258
    %p260 = pneg %p259
    // Predicated region
    $region45: #{fft_attention.1} parent=5 // pred_check
      _
    $region46: #{fft_attention.1} parent=5 // pred_check_branch
      %262 = sbr.rel (%p259) target = $region48
    $region47: #{fft_attention.1} parent=5 // pred_region
      %s263 = ssub.s32 %s13, 1
      %s264 = smul.u32 3, %s23
      %p265 = scmp.lt.s32.totalorder %s22, 1
      %s266 = scalar_select %p265, %s22, 1
      %p267 = scmp.lt.s32.totalorder %s264, 2
      %s268 = scalar_select %p267, %s264, 2
      %s269 = smul.addr %s266, 3
      %s270 = sadd.s32 %s268, %s269
      %s271 = smul.addr %s270, 4
      %s272 = scalar_lea.vmem %s0, %s271
      %p273 = pneg %p53
      %p274 = pneg %p50
      %p275 = pneg %p74
      %p276 = pneg %p71
      %p277 = pneg %p95
      %p278 = pneg %p92
      %p279 = pneg %p116
      %p280 = pneg %p113
      %p281 = pneg %p137
      %p282 = pneg %p134
      %p283 = pneg %p158
      %p284 = pneg %p155
      %p285 = pneg %p179
      %p286 = pneg %p176
      %p287 = pneg %p207
      %p288 = pneg %p204
      %s289 = smul.u32 3, %s23
      %p290 = scmp.lt.s32.totalorder %s22, 1
      %s291 = scalar_select %p290, %s22, 1
      %p292 = scmp.lt.s32.totalorder %s289, 2
      %s293 = scalar_select %p292, %s289, 2
      %s294 = smul.addr %s291, 3
      %s295 = sadd.s32 %s293, %s294
      %s296 = smul.addr %s295, 4
      %s297 = scalar_lea.vmem %s7, %s296
      %s298 = smul.u32 3, %s23
      %p299 = scmp.lt.s32.totalorder %s22, 1
      %s300 = scalar_select %p299, %s22, 1
      %p301 = scmp.lt.s32.totalorder %s298, 2
      %s302 = scalar_select %p301, %s298, 2
      %s303 = smul.addr %s300, 3
      %s304 = sadd.s32 %s302, %s303
      %s305 = smul.addr %s304, 4
      %s306 = scalar_lea.vmem %s0, %s305
      %s307 = smul.u32 3, %s23
      %s308 = smul.u32 3, %s23
      %p309 = scmp.lt.s32.totalorder %s22, 1
      %s310 = scalar_select %p309, %s22, 1
      %p311 = scmp.lt.s32.totalorder %s308, 2
      %s312 = scalar_select %p311, %s308, 2
      %s313 = smul.addr %s310, 3
      %s314 = sadd.s32 %s312, %s313
      %s315 = smul.addr %s314, 4
      %s316 = scalar_lea.vmem %s7, %s315
      %s317 = smul.u32 3, %s23
      %v318 = vld [vmem:[%s306] sm:$0xff]
      %v319 = vld [vmem:[%s306 + $0x8] sm:$0xf]
      %v320 = vld [vmem:[%s1] sm:$0x3]
      %v321 = vld [vmem:[%s3] sm:$0x3]
      %v322 = vld [vmem:[%s5] sm:$0xf]
      %v323 = vld [vmem:[%s2] sm:$0x3]
      %v324 = vld [vmem:[%s4] sm:$0x3]
      %v325 = vld [vmem:[%s6] sm:$0xf]
      %327 = vset.pattern.permute.xlu0 0
      %328 = vperm.xlu0 %327, %v323
      %v329 = vpop.permute.xlu0 %328
      %v333 = vcombine.high %v318, %v318
      %vm334 = vcmask 31744
      %v336 = vsel %vm334, %v320, 0
      %vm338 = vcmask 1043456
      %v339 = vsel %vm338, %v318, 0
      %v341 = vsel %vm338, %v333, 0
      %v343 = vsel %vm338, %v319, 0
      %345 = vmatprep.subr.mxu0 0.0
      %346 = vmatpush1.msra.mxu0 0.0
      %347 = vmatprep.subr.mxu0 0.0
      %348 = vmatpush1.msra.mxu0 0.0
      %349 = vmatprep.subr.mxu0 0.0
      %350 = vmatpush1.msra.mxu0 0.0
      %351 = vmatprep.subr.mxu0 0.0
      %352 = vmatpush1.msra.mxu0 0.0
      %353 = vmatprep.subr.mxu0 0.0
      %354 = vmatpush1.msra.mxu0 0.0
      %355 = vmatprep.subr.mxu0 0.0
      %356 = vmatpush1.msra.mxu0 0.0
      %357 = vmatprep.subr.mxu0 0.0
      %358 = vmatpush1.msra.mxu0 0.0
      %359 = vmatprep.subr.mxu0 0.0
      %360 = vmatpush1.msra.mxu0 0.0
      %361 = vmatprep.subr.mxu0 0.0
      %362 = vmatpush1.msra.mxu0 0.0
      %363 = vmatprep.subr.mxu0 0.0
      %364 = vmatpush1.msra.mxu0 0.0
      %365 = vmatprep.subr.mxu0 0.0
      %366 = vmatpush1.msra.mxu0 0.0
      %367 = vmatprep.subr.mxu0 0.0
      %368 = vmatpush1.msra.mxu0 0.0
      %369 = vmatprep.subr.mxu0 0.0
      %370 = vmatpush1.msra.mxu0 0.0
      %371 = vmatprep.subr.mxu0 0.0
      %372 = vmatpush1.msra.mxu0 0.0
      %373 = vmatprep.subr.mxu0 0.0
      %374 = vmatpush1.msra.mxu0 0.0
      %375 = vmatprep.subr.mxu0 %v341
      %376 = vmatpush1.msra.mxu0 %v339
      %377 = vmatprep.subr.mxu0 0.0
      %378 = vmatpush2.msra.mxu0 0.0
      %379 = vmatprep.subr.mxu0 0.0
      %380 = vmatpush2.msra.mxu0 0.0
      %381 = vmatprep.subr.mxu0 0.0
      %382 = vmatpush2.msra.mxu0 0.0
      %383 = vmatprep.subr.mxu0 0.0
      %384 = vmatpush2.msra.mxu0 0.0
      %385 = vmatprep.subr.mxu0 0.0
      %386 = vmatpush2.msra.mxu0 0.0
      %387 = vmatprep.subr.mxu0 0.0
      %388 = vmatpush2.msra.mxu0 0.0
      %389 = vmatprep.subr.mxu0 0.0
      %390 = vmatpush2.msra.mxu0 0.0
      %391 = vmatprep.subr.mxu0 0.0
      %392 = vmatpush2.msra.mxu0 0.0
      %393 = vmatprep.subr.mxu0 0.0
      %394 = vmatpush2.msra.mxu0 0.0
      %395 = vmatprep.subr.mxu0 0.0
      %396 = vmatpush2.msra.mxu0 0.0
      %397 = vmatprep.subr.mxu0 0.0
      %398 = vmatpush2.msra.mxu0 0.0
      %399 = vmatprep.subr.mxu0 0.0
      %400 = vmatpush2.msra.mxu0 0.0
      %401 = vmatprep.subr.mxu0 0.0
      %402 = vmatpush2.msra.mxu0 0.0
      %403 = vmatprep.subr.mxu0 0.0
      %404 = vmatpush2.msra.mxu0 0.0
      %405 = vmatprep.subr.mxu0 0.0
      %406 = vmatpush2.msra.mxu0 0.0
      %407 = vmatprep.subr.mxu0 0.0
      %408 = vmatpush2.msra.mxu0 0.0
      %409 = vmatprep.mubr.f32.mxu0 0.0
      %410 = vmatmul.mubr.f32.gmra.mxu0 %v336
      %v411 = vpop.f32.mrf.mxu0
      %v412 = vadd.f32 %v329, %v411
      %v413 = vpop.f32.mrf.mxu0
      %v414 = vadd.f32 %v329, %v413
      %415 = vdwg.mxu0
      %416 = vmatprep.subr.mxu0 0.0
      %417 = vmatpush1.msra.mxu0 0.0
      %418 = vmatprep.subr.mxu0 0.0
      %419 = vmatpush1.msra.mxu0 0.0
      %420 = vmatprep.subr.mxu0 0.0
      %421 = vmatpush1.msra.mxu0 0.0
      %422 = vmatprep.subr.mxu0 0.0
      %423 = vmatpush1.msra.mxu0 0.0
      %424 = vmatprep.subr.mxu0 0.0
      %425 = vmatpush1.msra.mxu0 0.0
      %426 = vmatprep.subr.mxu0 0.0
      %427 = vmatpush1.msra.mxu0 0.0
      %428 = vmatprep.subr.mxu0 0.0
      %429 = vmatpush1.msra.mxu0 0.0
      %430 = vmatprep.subr.mxu0 0.0
      %431 = vmatpush1.msra.mxu0 0.0
      %432 = vmatprep.subr.mxu0 0.0
      %433 = vmatpush1.msra.mxu0 0.0
      %434 = vmatprep.subr.mxu0 0.0
      %435 = vmatpush1.msra.mxu0 0.0
      %436 = vmatprep.subr.mxu0 0.0
      %437 = vmatpush1.msra.mxu0 0.0
      %438 = vmatprep.subr.mxu0 0.0
      %439 = vmatpush1.msra.mxu0 0.0
      %440 = vmatprep.subr.mxu0 0.0
      %441 = vmatpush1.msra.mxu0 0.0
      %442 = vmatprep.subr.mxu0 0.0
      %443 = vmatpush1.msra.mxu0 0.0
      %444 = vmatprep.subr.mxu0 0.0
      %445 = vmatpush1.msra.mxu0 0.0
      %446 = vmatprep.subr.mxu0 0.0
      %447 = vmatpush1.msra.mxu0 %v343
      %448 = vmatprep.subr.mxu0 0.0
      %449 = vmatpush2.msra.mxu0 0.0
      %450 = vmatprep.subr.mxu0 0.0
      %451 = vmatpush2.msra.mxu0 0.0
      %452 = vmatprep.subr.mxu0 0.0
      %453 = vmatpush2.msra.mxu0 0.0
      %454 = vmatprep.subr.mxu0 0.0
      %455 = vmatpush2.msra.mxu0 0.0
      %456 = vmatprep.subr.mxu0 0.0
      %457 = vmatpush2.msra.mxu0 0.0
      %458 = vmatprep.subr.mxu0 0.0
      %459 = vmatpush2.msra.mxu0 0.0
      %460 = vmatprep.subr.mxu0 0.0
      %461 = vmatpush2.msra.mxu0 0.0
      %462 = vmatprep.subr.mxu0 0.0
      %463 = vmatpush2.msra.mxu0 0.0
      %464 = vmatprep.subr.mxu0 0.0
      %465 = vmatpush2.msra.mxu0 0.0
      %466 = vmatprep.subr.mxu0 0.0
      %467 = vmatpush2.msra.mxu0 0.0
      %468 = vmatprep.subr.mxu0 0.0
      %469 = vmatpush2.msra.mxu0 0.0
      %470 = vmatprep.subr.mxu0 0.0
      %471 = vmatpush2.msra.mxu0 0.0
      %472 = vmatprep.subr.mxu0 0.0
      %473 = vmatpush2.msra.mxu0 0.0
      %474 = vmatprep.subr.mxu0 0.0
      %475 = vmatpush2.msra.mxu0 0.0
      %476 = vmatprep.subr.mxu0 0.0
      %477 = vmatpush2.msra.mxu0 0.0
      %478 = vmatprep.subr.mxu0 0.0
      %479 = vmatpush2.msra.mxu0 0.0
      %480 = vmatprep.mubr.f32.mxu0 0.0
      %481 = vmatmul.mubr.f32.gmra.mxu0 %v336
      %v482 = vpop.f32.mrf.mxu0
      %v483 = vadd.f32 %v329, %v482
      %v484 = vpop.f32.mrf.mxu0
      %485 = vdwg.mxu0
      %vm486 = vcmp.ge.f32.partialorder %v412, 0.0
      %vm487 = vcmp.ge.f32.partialorder %v414, 0.0
      %vm488 = vcmp.ge.f32.partialorder %v483, 0.0
      %v489 = vmul.f32 %v412, 0.2
      %v490 = vmul.f32 %v414, 0.2
      %v491 = vmul.f32 %v483, 0.2
      %v492 = vsel %vm486, %v412, %v489
      %v493 = vsel %vm487, %v414, %v490
      %v494 = vsel %vm488, %v483, %v491
      %496 = vset.pattern.permute.xlu0 0
      %497 = vperm.xlu0 %496, %v324
      %v498 = vpop.permute.xlu0 %497
      %vm500 = vcmask 15360
      %v502 = vsel %vm500, %v321, 0
      %vm504 = vcmask 1041408
      %v506 = vsel %vm504, %v492, 0
      %v509 = vsel %vm504, %v493, 0
      %v512 = vsel %vm504, %v494, 0
      %514 = vmatprep.subr.mxu0 0.0
      %515 = vmatpush1.msra.mxu0 0.0
      %516 = vmatprep.subr.mxu0 0.0
      %517 = vmatpush1.msra.mxu0 0.0
      %518 = vmatprep.subr.mxu0 0.0
      %519 = vmatpush1.msra.mxu0 0.0
      %520 = vmatprep.subr.mxu0 0.0
      %521 = vmatpush1.msra.mxu0 0.0
      %522 = vmatprep.subr.mxu0 0.0
      %523 = vmatpush1.msra.mxu0 0.0
      %524 = vmatprep.subr.mxu0 0.0
      %525 = vmatpush1.msra.mxu0 0.0
      %526 = vmatprep.subr.mxu0 0.0
      %527 = vmatpush1.msra.mxu0 0.0
      %528 = vmatprep.subr.mxu0 0.0
      %529 = vmatpush1.msra.mxu0 0.0
      %530 = vmatprep.subr.mxu0 0.0
      %531 = vmatpush1.msra.mxu0 0.0
      %532 = vmatprep.subr.mxu0 0.0
      %533 = vmatpush1.msra.mxu0 0.0
      %534 = vmatprep.subr.mxu0 0.0
      %535 = vmatpush1.msra.mxu0 0.0
      %536 = vmatprep.subr.mxu0 0.0
      %537 = vmatpush1.msra.mxu0 0.0
      %538 = vmatprep.subr.mxu0 0.0
      %539 = vmatpush1.msra.mxu0 0.0
      %540 = vmatprep.subr.mxu0 0.0
      %541 = vmatpush1.msra.mxu0 0.0
      %542 = vmatprep.subr.mxu0 0.0
      %543 = vmatpush1.msra.mxu0 0.0
      %544 = vmatprep.subr.mxu0 %v509
      %545 = vmatpush1.msra.mxu0 %v506
      %546 = vmatprep.subr.mxu0 0.0
      %547 = vmatpush2.msra.mxu0 0.0
      %548 = vmatprep.subr.mxu0 0.0
      %549 = vmatpush2.msra.mxu0 0.0
      %550 = vmatprep.subr.mxu0 0.0
      %551 = vmatpush2.msra.mxu0 0.0
      %552 = vmatprep.subr.mxu0 0.0
      %553 = vmatpush2.msra.mxu0 0.0
      %554 = vmatprep.subr.mxu0 0.0
      %555 = vmatpush2.msra.mxu0 0.0
      %556 = vmatprep.subr.mxu0 0.0
      %557 = vmatpush2.msra.mxu0 0.0
      %558 = vmatprep.subr.mxu0 0.0
      %559 = vmatpush2.msra.mxu0 0.0
      %560 = vmatprep.subr.mxu0 0.0
      %561 = vmatpush2.msra.mxu0 0.0
      %562 = vmatprep.subr.mxu0 0.0
      %563 = vmatpush2.msra.mxu0 0.0
      %564 = vmatprep.subr.mxu0 0.0
      %565 = vmatpush2.msra.mxu0 0.0
      %566 = vmatprep.subr.mxu0 0.0
      %567 = vmatpush2.msra.mxu0 0.0
      %568 = vmatprep.subr.mxu0 0.0
      %569 = vmatpush2.msra.mxu0 0.0
      %570 = vmatprep.subr.mxu0 0.0
      %571 = vmatpush2.msra.mxu0 0.0
      %572 = vmatprep.subr.mxu0 0.0
      %573 = vmatpush2.msra.mxu0 0.0
      %574 = vmatprep.subr.mxu0 0.0
      %575 = vmatpush2.msra.mxu0 0.0
      %576 = vmatprep.subr.mxu0 0.0
      %577 = vmatpush2.msra.mxu0 0.0
      %578 = vmatprep.mubr.f32.mxu0 0.0
      %579 = vmatmul.mubr.f32.gmra.mxu0 %v502
      %v580 = vpop.f32.mrf.mxu0
      %v581 = vadd.f32 %v498, %v580
      %v582 = vpop.f32.mrf.mxu0
      %v583 = vadd.f32 %v498, %v582
      %584 = vdwg.mxu0
      %585 = vmatprep.subr.mxu0 0.0
      %586 = vmatpush1.msra.mxu0 0.0
      %587 = vmatprep.subr.mxu0 0.0
      %588 = vmatpush1.msra.mxu0 0.0
      %589 = vmatprep.subr.mxu0 0.0
      %590 = vmatpush1.msra.mxu0 0.0
      %591 = vmatprep.subr.mxu0 0.0
      %592 = vmatpush1.msra.mxu0 0.0
      %593 = vmatprep.subr.mxu0 0.0
      %594 = vmatpush1.msra.mxu0 0.0
      %595 = vmatprep.subr.mxu0 0.0
      %596 = vmatpush1.msra.mxu0 0.0
      %597 = vmatprep.subr.mxu0 0.0
      %598 = vmatpush1.msra.mxu0 0.0
      %599 = vmatprep.subr.mxu0 0.0
      %600 = vmatpush1.msra.mxu0 0.0
      %601 = vmatprep.subr.mxu0 0.0
      %602 = vmatpush1.msra.mxu0 0.0
      %603 = vmatprep.subr.mxu0 0.0
      %604 = vmatpush1.msra.mxu0 0.0
      %605 = vmatprep.subr.mxu0 0.0
      %606 = vmatpush1.msra.mxu0 0.0
      %607 = vmatprep.subr.mxu0 0.0
      %608 = vmatpush1.msra.mxu0 0.0
      %609 = vmatprep.subr.mxu0 0.0
      %610 = vmatpush1.msra.mxu0 0.0
      %611 = vmatprep.subr.mxu0 0.0
      %612 = vmatpush1.msra.mxu0 0.0
      %613 = vmatprep.subr.mxu0 0.0
      %614 = vmatpush1.msra.mxu0 0.0
      %615 = vmatprep.subr.mxu0 0.0
      %616 = vmatpush1.msra.mxu0 %v512
      %617 = vmatprep.subr.mxu0 0.0
      %618 = vmatpush2.msra.mxu0 0.0
      %619 = vmatprep.subr.mxu0 0.0
      %620 = vmatpush2.msra.mxu0 0.0
      %621 = vmatprep.subr.mxu0 0.0
      %622 = vmatpush2.msra.mxu0 0.0
      %623 = vmatprep.subr.mxu0 0.0
      %624 = vmatpush2.msra.mxu0 0.0
      %625 = vmatprep.subr.mxu0 0.0
      %626 = vmatpush2.msra.mxu0 0.0
      %627 = vmatprep.subr.mxu0 0.0
      %628 = vmatpush2.msra.mxu0 0.0
      %629 = vmatprep.subr.mxu0 0.0
      %630 = vmatpush2.msra.mxu0 0.0
      %631 = vmatprep.subr.mxu0 0.0
      %632 = vmatpush2.msra.mxu0 0.0
      %633 = vmatprep.subr.mxu0 0.0
      %634 = vmatpush2.msra.mxu0 0.0
      %635 = vmatprep.subr.mxu0 0.0
      %636 = vmatpush2.msra.mxu0 0.0
      %637 = vmatprep.subr.mxu0 0.0
      %638 = vmatpush2.msra.mxu0 0.0
      %639 = vmatprep.subr.mxu0 0.0
      %640 = vmatpush2.msra.mxu0 0.0
      %641 = vmatprep.subr.mxu0 0.0
      %642 = vmatpush2.msra.mxu0 0.0
      %643 = vmatprep.subr.mxu0 0.0
      %644 = vmatpush2.msra.mxu0 0.0
      %645 = vmatprep.subr.mxu0 0.0
      %646 = vmatpush2.msra.mxu0 0.0
      %647 = vmatprep.subr.mxu0 0.0
      %648 = vmatpush2.msra.mxu0 0.0
      %649 = vmatprep.mubr.f32.mxu0 0.0
      %650 = vmatmul.mubr.f32.gmra.mxu0 %v502
      %v651 = vpop.f32.mrf.mxu0
      %v652 = vadd.f32 %v498, %v651
      %v653 = vpop.f32.mrf.mxu0
      %654 = vdwg.mxu0
      %vm655 = vcmp.ge.f32.partialorder %v581, 0.0
      %vm656 = vcmp.ge.f32.partialorder %v583, 0.0
      %vm657 = vcmp.ge.f32.partialorder %v652, 0.0
      %v658 = vmul.f32 %v581, 0.2
      %v659 = vmul.f32 %v583, 0.2
      %v660 = vmul.f32 %v652, 0.2
      %v661 = vsel %vm655, %v581, %v658
      %v662 = vsel %vm656, %v583, %v659
      %v663 = vsel %vm657, %v652, %v660
      %665 = vset.pattern.permute.xlu0 0
      %666 = vperm.xlu0 %665, %v325
      %v667 = vpop.permute.xlu0 %666
      %v670 = vsel %vm500, %v322, 0
      %v673 = vsel %vm504, %v661, 0
      %v676 = vsel %vm504, %v662, 0
      %v679 = vsel %vm504, %v663, 0
      %681 = vmatprep.subr.mxu0 0.0
      %682 = vmatpush1.msra.mxu0 0.0
      %683 = vmatprep.subr.mxu0 0.0
      %684 = vmatpush1.msra.mxu0 0.0
      %685 = vmatprep.subr.mxu0 0.0
      %686 = vmatpush1.msra.mxu0 0.0
      %687 = vmatprep.subr.mxu0 0.0
      %688 = vmatpush1.msra.mxu0 0.0
      %689 = vmatprep.subr.mxu0 0.0
      %690 = vmatpush1.msra.mxu0 0.0
      %691 = vmatprep.subr.mxu0 0.0
      %692 = vmatpush1.msra.mxu0 0.0
      %693 = vmatprep.subr.mxu0 0.0
      %694 = vmatpush1.msra.mxu0 0.0
      %695 = vmatprep.subr.mxu0 0.0
      %696 = vmatpush1.msra.mxu0 0.0
      %697 = vmatprep.subr.mxu0 0.0
      %698 = vmatpush1.msra.mxu0 0.0
      %699 = vmatprep.subr.mxu0 0.0
      %700 = vmatpush1.msra.mxu0 0.0
      %701 = vmatprep.subr.mxu0 0.0
      %702 = vmatpush1.msra.mxu0 0.0
      %703 = vmatprep.subr.mxu0 0.0
      %704 = vmatpush1.msra.mxu0 0.0
      %705 = vmatprep.subr.mxu0 0.0
      %706 = vmatpush1.msra.mxu0 0.0
      %707 = vmatprep.subr.mxu0 0.0
      %708 = vmatpush1.msra.mxu0 0.0
      %709 = vmatprep.subr.mxu0 0.0
      %710 = vmatpush1.msra.mxu0 0.0
      %711 = vmatprep.subr.mxu0 %v676
      %712 = vmatpush1.msra.mxu0 %v673
      %713 = vmatprep.subr.mxu0 0.0
      %714 = vmatpush2.msra.mxu0 0.0
      %715 = vmatprep.subr.mxu0 0.0
      %716 = vmatpush2.msra.mxu0 0.0
      %717 = vmatprep.subr.mxu0 0.0
      %718 = vmatpush2.msra.mxu0 0.0
      %719 = vmatprep.subr.mxu0 0.0
      %720 = vmatpush2.msra.mxu0 0.0
      %721 = vmatprep.subr.mxu0 0.0
      %722 = vmatpush2.msra.mxu0 0.0
      %723 = vmatprep.subr.mxu0 0.0
      %724 = vmatpush2.msra.mxu0 0.0
      %725 = vmatprep.subr.mxu0 0.0
      %726 = vmatpush2.msra.mxu0 0.0
      %727 = vmatprep.subr.mxu0 0.0
      %728 = vmatpush2.msra.mxu0 0.0
      %729 = vmatprep.subr.mxu0 0.0
      %730 = vmatpush2.msra.mxu0 0.0
      %731 = vmatprep.subr.mxu0 0.0
      %732 = vmatpush2.msra.mxu0 0.0
      %733 = vmatprep.subr.mxu0 0.0
      %734 = vmatpush2.msra.mxu0 0.0
      %735 = vmatprep.subr.mxu0 0.0
      %736 = vmatpush2.msra.mxu0 0.0
      %737 = vmatprep.subr.mxu0 0.0
      %738 = vmatpush2.msra.mxu0 0.0
      %739 = vmatprep.subr.mxu0 0.0
      %740 = vmatpush2.msra.mxu0 0.0
      %741 = vmatprep.subr.mxu0 0.0
      %742 = vmatpush2.msra.mxu0 0.0
      %743 = vmatprep.subr.mxu0 0.0
      %744 = vmatpush2.msra.mxu0 0.0
      %745 = vmatprep.mubr.f32.mxu0 0.0
      %746 = vmatmul.mubr.f32.gmra.mxu0 %v670
      %v747 = vpop.f32.mrf.mxu0
      %v748 = vadd.f32 %v667, %v747
      %v749 = vpop.f32.mrf.mxu0
      %v750 = vadd.f32 %v667, %v749
      %751 = vdwg.mxu0
      %752 = vmatprep.subr.mxu0 0.0
      %753 = vmatpush1.msra.mxu0 0.0
      %754 = vmatprep.subr.mxu0 0.0
      %755 = vmatpush1.msra.mxu0 0.0
      %756 = vmatprep.subr.mxu0 0.0
      %757 = vmatpush1.msra.mxu0 0.0
      %758 = vmatprep.subr.mxu0 0.0
      %759 = vmatpush1.msra.mxu0 0.0
      %760 = vmatprep.subr.mxu0 0.0
      %761 = vmatpush1.msra.mxu0 0.0
      %762 = vmatprep.subr.mxu0 0.0
      %763 = vmatpush1.msra.mxu0 0.0
      %764 = vmatprep.subr.mxu0 0.0
      %765 = vmatpush1.msra.mxu0 0.0
      %766 = vmatprep.subr.mxu0 0.0
      %767 = vmatpush1.msra.mxu0 0.0
      %768 = vmatprep.subr.mxu0 0.0
      %769 = vmatpush1.msra.mxu0 0.0
      %770 = vmatprep.subr.mxu0 0.0
      %771 = vmatpush1.msra.mxu0 0.0
      %772 = vmatprep.subr.mxu0 0.0
      %773 = vmatpush1.msra.mxu0 0.0
      %774 = vmatprep.subr.mxu0 0.0
      %775 = vmatpush1.msra.mxu0 0.0
      %776 = vmatprep.subr.mxu0 0.0
      %777 = vmatpush1.msra.mxu0 0.0
      %778 = vmatprep.subr.mxu0 0.0
      %779 = vmatpush1.msra.mxu0 0.0
      %780 = vmatprep.subr.mxu0 0.0
      %781 = vmatpush1.msra.mxu0 0.0
      %782 = vmatprep.subr.mxu0 0.0
      %783 = vmatpush1.msra.mxu0 %v679
      %784 = vmatprep.subr.mxu0 0.0
      %785 = vmatpush2.msra.mxu0 0.0
      %786 = vmatprep.subr.mxu0 0.0
      %787 = vmatpush2.msra.mxu0 0.0
      %788 = vmatprep.subr.mxu0 0.0
      %789 = vmatpush2.msra.mxu0 0.0
      %790 = vmatprep.subr.mxu0 0.0
      %791 = vmatpush2.msra.mxu0 0.0
      %792 = vmatprep.subr.mxu0 0.0
      %793 = vmatpush2.msra.mxu0 0.0
      %794 = vmatprep.subr.mxu0 0.0
      %795 = vmatpush2.msra.mxu0 0.0
      %796 = vmatprep.subr.mxu0 0.0
      %797 = vmatpush2.msra.mxu0 0.0
      %798 = vmatprep.subr.mxu0 0.0
      %799 = vmatpush2.msra.mxu0 0.0
      %800 = vmatprep.subr.mxu0 0.0
      %801 = vmatpush2.msra.mxu0 0.0
      %802 = vmatprep.subr.mxu0 0.0
      %803 = vmatpush2.msra.mxu0 0.0
      %804 = vmatprep.subr.mxu0 0.0
      %805 = vmatpush2.msra.mxu0 0.0
      %806 = vmatprep.subr.mxu0 0.0
      %807 = vmatpush2.msra.mxu0 0.0
      %808 = vmatprep.subr.mxu0 0.0
      %809 = vmatpush2.msra.mxu0 0.0
      %810 = vmatprep.subr.mxu0 0.0
      %811 = vmatpush2.msra.mxu0 0.0
      %812 = vmatprep.subr.mxu0 0.0
      %813 = vmatpush2.msra.mxu0 0.0
      %814 = vmatprep.subr.mxu0 0.0
      %815 = vmatpush2.msra.mxu0 0.0
      %816 = vmatprep.mubr.f32.mxu0 0.0
      %817 = vmatmul.mubr.f32.gmra.mxu0 %v670
      %v818 = vpop.f32.mrf.mxu0
      %v819 = vadd.f32 %v667, %v818
      %v820 = vpop.f32.mrf.mxu0
      %821 = vdwg.mxu0
      %v824 = vcombine.low %v748, %v750
      %v826 = vadd.f32 %v318, %v824
      %v827 = vadd.f32 %v319, %v819
      %828 = vst [vmem:[%s316] sm:$0xff] %v826
      %829 = vst [vmem:[%s316 + $0x8] sm:$0xf] %v827
      %s830 = smul.u32 3, %s23
      %p831 = scmp.lt.s32.totalorder %s22, 1
      %s832 = scalar_select %p831, %s22, 1
      %p833 = scmp.lt.s32.totalorder %s830, 2
      %s834 = scalar_select %p833, %s830, 2
      %s835 = smul.addr %s832, 3
      %s836 = sadd.s32 %s834, %s835
      %s837 = smul.addr %s836, 4
      %s838 = scalar_lea.vmem %s7, %s837
      // Predicated region
      $region49: #{fft_attention.1} parent=47 // pred_check
        %p839 = pneg %p204
      $region50: #{fft_attention.1} parent=47 // pred_check_branch
        %841 = sbr.rel (%p839) target = $region52
      $region51: #{fft_attention.1} parent=47 // pred_region
        %s842 = smul.u32 3, %s23
      $region52: #{fft_attention.1} parent=47 // pred_fallthru
        _
    $region48: #{fft_attention.1} parent=5 // pred_fallthru
      _
    %p843 = scmp.le.s32.totalorder 2, %s13
    // Predicated region
    $region53: #{fft_attention.1} parent=5 // pred_check
      %p844 = pneg %p843
    $region54: #{fft_attention.1} parent=5 // pred_check_branch
      %846 = sbr.rel (%p844) target = $region56
    $region55: #{fft_attention.1} parent=5 // pred_region
      %s847 = ssub.s32 %s13, 2
      // Predicated region
      $region57: #{fft_attention.1} parent=55 // pred_check
        %p848 = pneg %p210
      $region58: #{fft_attention.1} parent=55 // pred_check_branch
        %850 = sbr.rel (%p848) target = $region60
      $region59: #{fft_attention.1} parent=55 // pred_region
        %s851 = smul.u32 3, %s25
        %p852 = scmp.lt.s32.totalorder %s24, 1
        %s853 = scalar_select %p852, %s24, 1
        %p854 = scmp.lt.s32.totalorder %s851, 2
        %s855 = scalar_select %p854, %s851, 2
        %s856 = smul.addr %s853, 3
        %s857 = sadd.s32 %s855, %s856
        %s858 = smul.addr %s857, 4
        %s859 = scalar_lea.vmem %s7, %s858
      $region60: #{fft_attention.1} parent=55 // pred_fallthru
        _
    $region56: #{fft_attention.1} parent=5 // pred_fallthru
      _
  $region6: #{fft_attention.1} parent=0 // loop_footer
    %s17 = sadd.s32 1, %s13
  $region7: #{fft_attention.1} parent=0 // loop_footer_branch
    %12 = sbr.rel target = $region3
  $region8: #{fft_attention.1} parent=0 // loop_exit
    _

</llo_original>
